<compile_context>
chip_gen: v5e
topology: v5e:2x2
jax: 0.10.0
libtpu: 0.0.40
codegen_flags: <defaults>
</compile_context>

<pallas_src>
import functools

import jax
import jax.numpy as jnp
from jax.experimental import pallas as pl
from jax.experimental.pallas import tpu as pltpu

LANE = 128  # pad feature dims to this; use 256 on v6e/v7x for MXU-native tiles


def _round_up(x, m):
    return ((x + m - 1) // m) * m


def _leaky_relu(x, slope=0.01):
    # matches torch.nn.functional.leaky_relu default negative_slope=0.01
    return jnp.where(x > 0, x, slope * x)


def qnetwork_kernel(x_ref, w1_ref, b1_ref, w2_ref, b2_ref, w3_ref, b3_ref, o_ref):
    # x_ref: (TILE_B, IN_P) bf16; weights bf16; biases f32; output f32.
    x = x_ref[...]
    # fc_1 + leaky_relu (MXU bf16 x bf16 -> f32 accum; elementwise in f32)
    h1 = jnp.dot(x, w1_ref[...], preferred_element_type=jnp.float32) + b1_ref[...]
    h1 = _leaky_relu(h1)
    # fc_2 + leaky_relu
    h2 = (
        jnp.dot(h1.astype(w2_ref.dtype), w2_ref[...], preferred_element_type=jnp.float32)
        + b2_ref[...]
    )
    h2 = _leaky_relu(h2)
    # fc_3 (no activation); lane-dense (padded) unmasked store
    o_ref[...] = (
        jnp.dot(h2.astype(w3_ref.dtype), w3_ref[...], preferred_element_type=jnp.float32)
        + b3_ref[...]
    ).astype(o_ref.dtype)


def init_params(key, input_size, hidden_dims, output_size):
    """Logical (unpadded, f32) params; uniform init like PyTorch's fan-in bound."""
    ks = jax.random.split(key, 6)

    def linear(kw, kb, fan_in, fan_out):
        bound = 1.0 / jnp.sqrt(fan_in)
        w = jax.random.uniform(kw, (fan_in, fan_out), jnp.float32, -bound, bound)
        b = jax.random.uniform(kb, (1, fan_out), jnp.float32, -bound, bound)
        return w, b

    w1, b1 = linear(ks[0], ks[1], input_size, hidden_dims)
    w2, b2 = linear(ks[2], ks[3], hidden_dims, hidden_dims)
    w3, b3 = linear(ks[4], ks[5], hidden_dims, output_size)
    return (w1, b1, w2, b2, w3, b3)


def prepare_params(params, lane=LANE):
    """Pad every feature dim to a lane multiple; weights -> bf16, biases -> f32.

    Zero padding is semantics-preserving: padded hidden pre-activations are 0,
    leaky_relu(0) == 0, and padded weight rows contribute nothing downstream.
    """
    w1, b1, w2, b2, w3, b3 = params
    in_p = _round_up(w1.shape[0], lane)
    hid_p = _round_up(w1.shape[1], lane)
    out_p = _round_up(w3.shape[1], lane)

    def pad_w(w, rows, cols):
        return jnp.pad(w, ((0, rows - w.shape[0]), (0, cols - w.shape[1]))).astype(
            jnp.bfloat16
        )

    def pad_b(b, cols):
        return jnp.pad(b, ((0, 0), (0, cols - b.shape[1]))).astype(jnp.float32)

    padded = (
        pad_w(w1, in_p, hid_p), pad_b(b1, hid_p),
        pad_w(w2, hid_p, hid_p), pad_b(b2, hid_p),
        pad_w(w3, hid_p, out_p), pad_b(b3, out_p),
    )
    return padded, (in_p, hid_p, out_p)


@functools.partial(jax.jit, static_argnames=("output_size", "tile_b"))
def qnetwork_forward(x, padded_params, *, output_size, tile_b=128):
    """Fused 3-layer MLP forward over a batch grid; returns (batch, output_size) f32."""
    w1, b1, w2, b2, w3, b3 = padded_params
    batch, in_features = x.shape
    in_p, hid_p = w1.shape
    out_p = w3.shape[1]

    # Batch tile: multiple of 8 (f32 sublanes), no larger than the padded batch.
    tile_b = max(8, (min(tile_b, _round_up(batch, 8)) // 8) * 8)
    batch_p = _round_up(batch, tile_b)
    grid = (batch_p // tile_b,)

    # Pad batch + input features; feed bf16 activations to the MXU.
    x_p = jnp.zeros((batch_p, in_p), jnp.bfloat16)
    x_p = x_p.at[:batch, :in_features].set(x.astype(jnp.bfloat16))

    # VMEM budget: resident weights/biases + double-buffered activation tiles.
    weight_bytes = (w1.size + w2.size + w3.size) * 2
    bias_bytes = (b1.size + b2.size + b3.size) * 4
    act_bytes = 2 * (tile_b * in_p * 2 + tile_b * out_p * 4)
    vmem_limit = int(min(max(2 * (weight_bytes + bias_bytes + act_bytes), 32 << 20),
                         48 << 20))

    flops = 2 * batch_p * (in_p * hid_p + hid_p * hid_p + hid_p * out_p)
    bytes_accessed = int(
        x_p.size * 2 + weight_bytes + bias_bytes + batch_p * out_p * 4
    )

    out_padded = pl.pallas_call(
        qnetwork_kernel,
        out_shape=jax.ShapeDtypeStruct((batch_p, out_p), jnp.float32),
        grid_spec=pltpu.PrefetchScalarGridSpec(
            num_scalar_prefetch=0,
            grid=grid,
            in_specs=[
                pl.BlockSpec((tile_b, in_p), lambda i: (i, 0)),   # x tile (pipelined)
                pl.BlockSpec((in_p, hid_p), lambda i: (0, 0)),    # W1 (resident)
                pl.BlockSpec((1, hid_p), lambda i: (0, 0)),       # b1 (resident)
                pl.BlockSpec((hid_p, hid_p), lambda i: (0, 0)),   # W2 (resident)
                pl.BlockSpec((1, hid_p), lambda i: (0, 0)),       # b2 (resident)
                pl.BlockSpec((hid_p, out_p), lambda i: (0, 0)),   # W3 (resident)
                pl.BlockSpec((1, out_p), lambda i: (0, 0)),       # b3 (resident)
            ],
            out_specs=pl.BlockSpec((tile_b, out_p), lambda i: (i, 0)),
        ),
        compiler_params=pltpu.CompilerParams(
            dimension_semantics=("parallel",),
            vmem_limit_bytes=vmem_limit,
        ),
        cost_estimate=pl.CostEstimate(
            flops=flops, transcendentals=0, bytes_accessed=bytes_accessed
        ),
    )(x_p, w1, b1, w2, b2, w3, b3)

    return out_padded[:batch, :output_size]


def reference_forward(x, params):
    """Pure-JAX reference mirroring the kernel's math (bf16 MXU inputs, f32 accum)."""
    w1, b1, w2, b2, w3, b3 = params

    def lin(a, w, b):
        return (
            jnp.dot(a.astype(jnp.bfloat16), w.astype(jnp.bfloat16),
                    preferred_element_type=jnp.float32)
            + b
        )

    h1 = _leaky_relu(lin(x, w1, b1))
    h2 = _leaky_relu(lin(h1, w2, b2))
    return lin(h2, w3, b3)


if __name__ == "__main__":
    # Small shapes consistent with the module: input_size=16, hidden_dims=32,
    # output_size=4. batch=16 with TILE_B=8 exercises the batch grid (2 steps)
    # while staying tiny.
    input_size, hidden_dims, output_size = 16, 32, 4
    batch = 16

    key = jax.random.PRNGKey(0)
    k_x, k_p = jax.random.split(key)
    x = jax.random.normal(k_x, (batch, input_size), dtype=jnp.float32)

    params = init_params(k_p, input_size, hidden_dims, output_size)
    padded_params, _ = prepare_params(params)

    out = qnetwork_forward(x, padded_params, output_size=output_size, tile_b=8)
    out = jax.block_until_ready(out)

    ref = reference_forward(x, params)
    assert out.shape == (batch, output_size)
    assert jnp.allclose(out, ref, atol=1e-4, rtol=1e-4), (
        float(jnp.max(jnp.abs(out - ref)))
    )

    print("KERNEL_OK")
</pallas_src>

<mosaic_0001>
module attributes {stable_mosaic.version = 11 : i64} {
  func.func @qnetwork_kernel(%arg0: i32, %arg1: memref<8x128xbf16, #tpu.memory_space<vmem>>, %arg2: memref<128x128xbf16, #tpu.memory_space<vmem>>, %arg3: memref<1x128xf32, #tpu.memory_space<vmem>>, %arg4: memref<128x128xbf16, #tpu.memory_space<vmem>>, %arg5: memref<1x128xf32, #tpu.memory_space<vmem>>, %arg6: memref<128x128xbf16, #tpu.memory_space<vmem>>, %arg7: memref<1x128xf32, #tpu.memory_space<vmem>>, %arg8: memref<8x128xf32, #tpu.memory_space<vmem>>) attributes {dimension_semantics = [#tpu.dimension_semantics<parallel>], iteration_bounds = array<i64: 2>, scalar_prefetch = 0 : i64, scratch_operands = 0 : i64, tpu.core_type = #tpu.core_type<tc>, window_params = [{transform_indices = @transform_0, window_bounds = array<i64: 8, 128>}, {pipeline_mode = #tpu.pipeline_mode<synchronous>, transform_indices = @transform_1, window_bounds = array<i64: 128, 128>}, {pipeline_mode = #tpu.pipeline_mode<synchronous>, transform_indices = @transform_2, window_bounds = array<i64: 1, 128>}, {pipeline_mode = #tpu.pipeline_mode<synchronous>, transform_indices = @transform_3, window_bounds = array<i64: 128, 128>}, {pipeline_mode = #tpu.pipeline_mode<synchronous>, transform_indices = @transform_4, window_bounds = array<i64: 1, 128>}, {pipeline_mode = #tpu.pipeline_mode<synchronous>, transform_indices = @transform_5, window_bounds = array<i64: 128, 128>}, {pipeline_mode = #tpu.pipeline_mode<synchronous>, transform_indices = @transform_6, window_bounds = array<i64: 1, 128>}, {transform_indices = @transform_7, window_bounds = array<i64: 8, 128>}]} {
    %c0 = arith.constant 0 : index
    %c0_0 = arith.constant 0 : index
    %0 = vector.load %arg1[%c0, %c0_0] : memref<8x128xbf16, #tpu.memory_space<vmem>>, vector<8x128xbf16>
    %c0_1 = arith.constant 0 : index
    %c0_2 = arith.constant 0 : index
    %1 = vector.load %arg2[%c0_1, %c0_2] : memref<128x128xbf16, #tpu.memory_space<vmem>>, vector<128x128xbf16>
    %cst = arith.constant dense<0.000000e+00> : vector<8x128xf32>
    %2 = tpu.matmul %0, %1, %cst {dimension_numbers = #tpu.dot_dimension_numbers<[1], [0], [0], [1], [0, 0, 1, 1], [], []>} : vector<8x128xbf16>, vector<128x128xbf16>, vector<8x128xf32> -> vector<8x128xf32>
    %c0_3 = arith.constant 0 : index
    %c0_4 = arith.constant 0 : index
    %3 = vector.load %arg3[%c0_3, %c0_4] : memref<1x128xf32, #tpu.memory_space<vmem>>, vector<1x128xf32>
    %4 = vector.broadcast %3 : vector<1x128xf32> to vector<8x128xf32>
    %5 = arith.addf %2, %4 : vector<8x128xf32>
    %cst_5 = arith.constant 0.000000e+00 : f32
    %6 = vector.broadcast %cst_5 : f32 to vector<8x128xf32>
    %7 = arith.cmpf ogt, %5, %6 : vector<8x128xf32>
    %cst_6 = arith.constant 0.00999999977 : f32
    %8 = vector.broadcast %cst_6 : f32 to vector<8x128xf32>
    %9 = arith.mulf %8, %5 : vector<8x128xf32>
    %10 = arith.select %7, %5, %9 : vector<8x128xi1>, vector<8x128xf32>
    %11 = arith.truncf %10 : vector<8x128xf32> to vector<8x128xbf16>
    %c0_7 = arith.constant 0 : index
    %c0_8 = arith.constant 0 : index
    %12 = vector.load %arg4[%c0_7, %c0_8] : memref<128x128xbf16, #tpu.memory_space<vmem>>, vector<128x128xbf16>
    %cst_9 = arith.constant dense<0.000000e+00> : vector<8x128xf32>
    %13 = tpu.matmul %11, %12, %cst_9 {dimension_numbers = #tpu.dot_dimension_numbers<[1], [0], [0], [1], [0, 0, 1, 1], [], []>} : vector<8x128xbf16>, vector<128x128xbf16>, vector<8x128xf32> -> vector<8x128xf32>
    %c0_10 = arith.constant 0 : index
    %c0_11 = arith.constant 0 : index
    %14 = vector.load %arg5[%c0_10, %c0_11] : memref<1x128xf32, #tpu.memory_space<vmem>>, vector<1x128xf32>
    %15 = vector.broadcast %14 : vector<1x128xf32> to vector<8x128xf32>
    %16 = arith.addf %13, %15 : vector<8x128xf32>
    %cst_12 = arith.constant 0.000000e+00 : f32
    %17 = vector.broadcast %cst_12 : f32 to vector<8x128xf32>
    %18 = arith.cmpf ogt, %16, %17 : vector<8x128xf32>
    %cst_13 = arith.constant 0.00999999977 : f32
    %19 = vector.broadcast %cst_13 : f32 to vector<8x128xf32>
    %20 = arith.mulf %19, %16 : vector<8x128xf32>
    %21 = arith.select %18, %16, %20 : vector<8x128xi1>, vector<8x128xf32>
    %22 = arith.truncf %21 : vector<8x128xf32> to vector<8x128xbf16>
    %c0_14 = arith.constant 0 : index
    %c0_15 = arith.constant 0 : index
    %23 = vector.load %arg6[%c0_14, %c0_15] : memref<128x128xbf16, #tpu.memory_space<vmem>>, vector<128x128xbf16>
    %cst_16 = arith.constant dense<0.000000e+00> : vector<8x128xf32>
    %24 = tpu.matmul %22, %23, %cst_16 {dimension_numbers = #tpu.dot_dimension_numbers<[1], [0], [0], [1], [0, 0, 1, 1], [], []>} : vector<8x128xbf16>, vector<128x128xbf16>, vector<8x128xf32> -> vector<8x128xf32>
    %c0_17 = arith.constant 0 : index
    %c0_18 = arith.constant 0 : index
    %25 = vector.load %arg7[%c0_17, %c0_18] : memref<1x128xf32, #tpu.memory_space<vmem>>, vector<1x128xf32>
    %26 = vector.broadcast %25 : vector<1x128xf32> to vector<8x128xf32>
    %27 = arith.addf %24, %26 : vector<8x128xf32>
    %c0_19 = arith.constant 0 : index
    %c0_20 = arith.constant 0 : index
    %28 = vector.load %arg8[%c0_19, %c0_20] : memref<8x128xf32, #tpu.memory_space<vmem>>, vector<8x128xf32>
    tpu.vector_store %arg8[%c0_19, %c0_20], %27 {strides = array<i32>} : memref<8x128xf32, #tpu.memory_space<vmem>>, vector<8x128xf32>,
    return
  }
  func.func @transform_0(%arg0: i32) -> (i32, i32) {
    %c0_i32 = arith.constant 0 : i32
    %c0_i32_0 = arith.constant 0 : i32
    return %arg0, %c0_i32 : i32, i32
  }
  func.func @transform_1(%arg0: i32) -> (i32, i32) {
    %c0_i32 = arith.constant 0 : i32
    %c0_i32_0 = arith.constant 0 : i32
    %c0_i32_1 = arith.constant 0 : i32
    return %c0_i32, %c0_i32_0 : i32, i32
  }
  func.func @transform_2(%arg0: i32) -> (i32, i32) {
    %c0_i32 = arith.constant 0 : i32
    %c0_i32_0 = arith.constant 0 : i32
    %c0_i32_1 = arith.constant 0 : i32
    return %c0_i32, %c0_i32_0 : i32, i32
  }
  func.func @transform_3(%arg0: i32) -> (i32, i32) {
    %c0_i32 = arith.constant 0 : i32
    %c0_i32_0 = arith.constant 0 : i32
    %c0_i32_1 = arith.constant 0 : i32
    return %c0_i32, %c0_i32_0 : i32, i32
  }
  func.func @transform_4(%arg0: i32) -> (i32, i32) {
    %c0_i32 = arith.constant 0 : i32
    %c0_i32_0 = arith.constant 0 : i32
    %c0_i32_1 = arith.constant 0 : i32
    return %c0_i32, %c0_i32_0 : i32, i32
  }
  func.func @transform_5(%arg0: i32) -> (i32, i32) {
    %c0_i32 = arith.constant 0 : i32
    %c0_i32_0 = arith.constant 0 : i32
    %c0_i32_1 = arith.constant 0 : i32
    return %c0_i32, %c0_i32_0 : i32, i32
  }
  func.func @transform_6(%arg0: i32) -> (i32, i32) {
    %c0_i32 = arith.constant 0 : i32
    %c0_i32_0 = arith.constant 0 : i32
    %c0_i32_1 = arith.constant 0 : i32
    return %c0_i32, %c0_i32_0 : i32, i32
  }
  func.func @transform_7(%arg0: i32) -> (i32, i32) {
    %c0_i32 = arith.constant 0 : i32
    %c0_i32_0 = arith.constant 0 : i32
    return %arg0, %c0_i32 : i32, i32
  }
}

</mosaic_0001>

<llo_original>
// kernel: qnetwork_forward.1
$region0: #{qnetwork_forward.1}
  #allocation0 [shape = 'u32[]', space=smem, size = 0x4, offset = 0x4, fixed_abs, tag = 'smem constant byte address 0x4 - core index']
  #allocation1 [shape = 'u32[72,128]{1,0:T(1,128)}', space=vmem, size = 0x9000, scoped, tag = 'internal scratch']
  %s0 = inlined_call_operand.vmem [shape: bf16[16,128], index: 0, kind: input, shape index: {}]
  %s1 = inlined_call_operand.hbm [shape: bf16[128,128], index: 1, kind: input, shape index: {}]
  %s2 = inlined_call_operand.vmem [shape: f32[1,128], index: 2, kind: input, shape index: {}]
  %s3 = inlined_call_operand.hbm [shape: bf16[128,128], index: 3, kind: input, shape index: {}]
  %s4 = inlined_call_operand.vmem [shape: f32[1,128], index: 4, kind: input, shape index: {}]
  %s5 = inlined_call_operand.hbm [shape: bf16[128,128], index: 5, kind: input, shape index: {}]
  %s6 = inlined_call_operand.vmem [shape: f32[1,128], index: 6, kind: input, shape index: {}]
  %s7 = inlined_call_operand.vmem [shape: f32[16,128], index: 7, kind: output, shape index: {}]
  %s8 = sld [smem:[#allocation0]]
  $region73: #{qnetwork_forward.1} parent=0
    _
  %s10 = ssub.s32 1, %s8
  %s11 = scalar_select 0, %s10, %s8
  $region1: #{qnetwork_forward.1} parent=0
    #allocation2 [shape = 'u8[32768]{0}', space=vmem, size = 0x8000, scoped, tag = 'input window, operand 1, single buffered']
    #allocation3 [shape = 's32[2]{0}', space=sflag, size = 0x8, scoped, tag = 'scoped memory for qnetwork_forward.1']
    #allocation4 [shape = 'u8[32768]{0}', space=vmem, size = 0x8000, scoped, tag = 'input window, operand 3, single buffered']
    #allocation5 [shape = 's32[1]{0}', space=sflag, size = 0x4, scoped, tag = 'scoped memory for qnetwork_forward.1']
    #allocation6 [shape = 'u8[32768]{0}', space=vmem, size = 0x8000, scoped, tag = 'input window, operand 5, single buffered']
    %12 = vsyncpa [#allocation3], 0
    %13 = vsyncpa [#allocation5], 0
    loop: start=0, step=1, limit=4
    $region2: #{qnetwork_forward.1} parent=1 // loop_pre_header
      _
    $region3: #{qnetwork_forward.1} parent=1 // loop_header
      %s15 = sphi 0, %s19
      %p16 = scmp.ge.s32.totalorder %s15, 4
      %s25 = sphi 0, %s27
      %s28 = sphi 0, %s25
      %s29 = sphi 0, %s28
      %s45 = sphi 0, %s29
      %s49 = sphi 0, %s49
      %s51 = sphi 0, %s49
      %s52 = sphi 0, %s51
      %s66 = sphi 0, %s52
      %s70 = sphi 0, %s70
      %s72 = sphi 0, %s70
      %s73 = sphi 0, %s72
      %s87 = sphi 0, %s73
      %s91 = sphi 0, %s91
      %s93 = sphi 0, %s91
      %s94 = sphi 0, %s93
      %s108 = sphi 0, %s94
      %s112 = sphi 0, %s112
      %s114 = sphi 0, %s112
      %s115 = sphi 0, %s114
      %s129 = sphi 0, %s115
      %s133 = sphi 0, %s133
      %s135 = sphi 0, %s133
      %s136 = sphi 0, %s135
      %s150 = sphi 0, %s136
      %s154 = sphi 0, %s154
      %s156 = sphi 0, %s154
      %s157 = sphi 0, %s156
      %s171 = sphi 0, %s157
      %s177 = sphi 0, %s179
      %s180 = sphi 0, %s177
      %s181 = sphi 0, %s180
      %s197 = sphi 0, %s181
    $region4: #{qnetwork_forward.1} parent=1 // loop_header_branch
      %18 = sbr.rel (%p16) target = $region8
    $region5: #{qnetwork_forward.1} parent=1 // loop_body
      %s20 = ssub.s32 %s15, 1
      %s21 = ssub.s32 %s15, 2
      %s22 = sadd.s32 %s15, 1
      %s23 = ssub.s32 %s15, %s22
      %p24 = scmp.eq.s32.totalorder %s23, 0
      %s26 = sadd.s32 %s25, 1
      %s27 = scalar_select %p24, %s25, %s26
      %p30 = pneg %p24
      %p31 = scmp.eq.s32.totalorder %s15, 1
      %p32 = por %p30, %p31
      %p33 = scmp.ne.s32.totalorder %s25, %s28
      %p34 = scmp.eq.s32.totalorder %s15, 0
      %p35 = por %p33, %p34
      %p36 = scmp.ne.s32.totalorder %s25, %s28
      %p37 = scmp.eq.s32.totalorder %s20, 1
      %p38 = por %p36, %p37
      %p39 = scmp.ne.s32.totalorder %s28, %s29
      %p40 = scmp.eq.s32.totalorder %s20, 0
      %p41 = por %p39, %p40
      %p42 = scmp.ne.s32.totalorder %s28, %s29
      %p43 = scmp.eq.s32.totalorder %s21, 1
      %p44 = por %p42, %p43
      %p46 = scmp.ne.s32.totalorder %s29, %s45
      %p47 = scmp.eq.s32.totalorder %s21, 0
      %p48 = por %p46, %p47
      %s50 = sadd.s32 %s49, 1
      %p53 = scmp.eq.s32.totalorder %s15, 1
      %p54 = scmp.ne.s32.totalorder %s49, %s51
      %p55 = scmp.eq.s32.totalorder %s15, 0
      %p56 = por %p54, %p55
      %p57 = scmp.ne.s32.totalorder %s49, %s51
      %p58 = scmp.eq.s32.totalorder %s20, 1
      %p59 = por %p57, %p58
      %p60 = scmp.ne.s32.totalorder %s51, %s52
      %p61 = scmp.eq.s32.totalorder %s20, 0
      %p62 = por %p60, %p61
      %p63 = scmp.ne.s32.totalorder %s51, %s52
      %p64 = scmp.eq.s32.totalorder %s21, 1
      %p65 = por %p63, %p64
      %p67 = scmp.ne.s32.totalorder %s52, %s66
      %p68 = scmp.eq.s32.totalorder %s21, 0
      %p69 = por %p67, %p68
      %s71 = sadd.s32 %s70, 1
      %p74 = scmp.eq.s32.totalorder %s15, 1
      %p75 = scmp.ne.s32.totalorder %s70, %s72
      %p76 = scmp.eq.s32.totalorder %s15, 0
      %p77 = por %p75, %p76
      %p78 = scmp.ne.s32.totalorder %s70, %s72
      %p79 = scmp.eq.s32.totalorder %s20, 1
      %p80 = por %p78, %p79
      %p81 = scmp.ne.s32.totalorder %s72, %s73
      %p82 = scmp.eq.s32.totalorder %s20, 0
      %p83 = por %p81, %p82
      %p84 = scmp.ne.s32.totalorder %s72, %s73
      %p85 = scmp.eq.s32.totalorder %s21, 1
      %p86 = por %p84, %p85
      %p88 = scmp.ne.s32.totalorder %s73, %s87
      %p89 = scmp.eq.s32.totalorder %s21, 0
      %p90 = por %p88, %p89
      %s92 = sadd.s32 %s91, 1
      %p95 = scmp.eq.s32.totalorder %s15, 1
      %p96 = scmp.ne.s32.totalorder %s91, %s93
      %p97 = scmp.eq.s32.totalorder %s15, 0
      %p98 = por %p96, %p97
      %p99 = scmp.ne.s32.totalorder %s91, %s93
      %p100 = scmp.eq.s32.totalorder %s20, 1
      %p101 = por %p99, %p100
      %p102 = scmp.ne.s32.totalorder %s93, %s94
      %p103 = scmp.eq.s32.totalorder %s20, 0
      %p104 = por %p102, %p103
      %p105 = scmp.ne.s32.totalorder %s93, %s94
      %p106 = scmp.eq.s32.totalorder %s21, 1
      %p107 = por %p105, %p106
      %p109 = scmp.ne.s32.totalorder %s94, %s108
      %p110 = scmp.eq.s32.totalorder %s21, 0
      %p111 = por %p109, %p110
      %s113 = sadd.s32 %s112, 1
      %p116 = scmp.eq.s32.totalorder %s15, 1
      %p117 = scmp.ne.s32.totalorder %s112, %s114
      %p118 = scmp.eq.s32.totalorder %s15, 0
      %p119 = por %p117, %p118
      %p120 = scmp.ne.s32.totalorder %s112, %s114
      %p121 = scmp.eq.s32.totalorder %s20, 1
      %p122 = por %p120, %p121
      %p123 = scmp.ne.s32.totalorder %s114, %s115
      %p124 = scmp.eq.s32.totalorder %s20, 0
      %p125 = por %p123, %p124
      %p126 = scmp.ne.s32.totalorder %s114, %s115
      %p127 = scmp.eq.s32.totalorder %s21, 1
      %p128 = por %p126, %p127
      %p130 = scmp.ne.s32.totalorder %s115, %s129
      %p131 = scmp.eq.s32.totalorder %s21, 0
      %p132 = por %p130, %p131
      %s134 = sadd.s32 %s133, 1
      %p137 = scmp.eq.s32.totalorder %s15, 1
      %p138 = scmp.ne.s32.totalorder %s133, %s135
      %p139 = scmp.eq.s32.totalorder %s15, 0
      %p140 = por %p138, %p139
      %p141 = scmp.ne.s32.totalorder %s133, %s135
      %p142 = scmp.eq.s32.totalorder %s20, 1
      %p143 = por %p141, %p142
      %p144 = scmp.ne.s32.totalorder %s135, %s136
      %p145 = scmp.eq.s32.totalorder %s20, 0
      %p146 = por %p144, %p145
      %p147 = scmp.ne.s32.totalorder %s135, %s136
      %p148 = scmp.eq.s32.totalorder %s21, 1
      %p149 = por %p147, %p148
      %p151 = scmp.ne.s32.totalorder %s136, %s150
      %p152 = scmp.eq.s32.totalorder %s21, 0
      %p153 = por %p151, %p152
      %s155 = sadd.s32 %s154, 1
      %p158 = scmp.eq.s32.totalorder %s15, 1
      %p159 = scmp.ne.s32.totalorder %s154, %s156
      %p160 = scmp.eq.s32.totalorder %s15, 0
      %p161 = por %p159, %p160
      %p162 = scmp.ne.s32.totalorder %s154, %s156
      %p163 = scmp.eq.s32.totalorder %s20, 1
      %p164 = por %p162, %p163
      %p165 = scmp.ne.s32.totalorder %s156, %s157
      %p166 = scmp.eq.s32.totalorder %s20, 0
      %p167 = por %p165, %p166
      %p168 = scmp.ne.s32.totalorder %s156, %s157
      %p169 = scmp.eq.s32.totalorder %s21, 1
      %p170 = por %p168, %p169
      %p172 = scmp.ne.s32.totalorder %s157, %s171
      %p173 = scmp.eq.s32.totalorder %s21, 0
      %p174 = por %p172, %p173
      %s175 = ssub.s32 %s15, %s22
      %p176 = scmp.eq.s32.totalorder %s175, 0
      %s178 = sadd.s32 %s177, 1
      %s179 = scalar_select %p176, %s177, %s178
      %p182 = pneg %p176
      %p183 = scmp.eq.s32.totalorder %s15, 1
      %p184 = por %p182, %p183
      %p185 = scmp.ne.s32.totalorder %s177, %s180
      %p186 = scmp.eq.s32.totalorder %s15, 0
      %p187 = por %p185, %p186
      %p188 = scmp.ne.s32.totalorder %s177, %s180
      %p189 = scmp.eq.s32.totalorder %s20, 1
      %p190 = por %p188, %p189
      %p191 = scmp.ne.s32.totalorder %s180, %s181
      %p192 = scmp.eq.s32.totalorder %s20, 0
      %p193 = por %p191, %p192
      %p194 = scmp.ne.s32.totalorder %s180, %s181
      %p195 = scmp.eq.s32.totalorder %s21, 1
      %p196 = por %p194, %p195
      %p198 = scmp.ne.s32.totalorder %s181, %s197
      %p199 = scmp.eq.s32.totalorder %s21, 0
      %p200 = por %p198, %p199
      %p201 = scmp.le.s32.totalorder 1, %s15
      %p202 = scmp.lt.s32.totalorder %s15, 3
      %p203 = pnand %p201, %p202
      %p204 = pneg %p203
      // Predicated region
      $region9: #{qnetwork_forward.1} parent=5 // pred_check
        _
      $region10: #{qnetwork_forward.1} parent=5 // pred_check_branch
        %206 = sbr.rel (%p203) target = $region12
      $region11: #{qnetwork_forward.1} parent=5 // pred_region
        %s207 = ssub.s32 %s15, 1
        // Predicated region
        $region13: #{qnetwork_forward.1} parent=11 // pred_check
          %p208 = pneg %p62
        $region14: #{qnetwork_forward.1} parent=11 // pred_check_branch
          %210 = sbr.rel (%p208) target = $region16
        $region15: #{qnetwork_forward.1} parent=11 // pred_region
          %212 = vsyncadd [#allocation3], 0
          %s213 = sshll.u32 %s1, 4
          %s214 = int_to_ptr.hbm [resolvable:$true] %s213
          %s215 = sshll.u32 [#allocation2], 4
          %s216 = int_to_ptr.vmem [resolvable:$true] %s215
          %221 = dma.hbm_to_vmem [thread:$0]  %s214, 1024, %s216, [#allocation3], 64, 64, 4
        $region16: #{qnetwork_forward.1} parent=11 // pred_fallthru
          _
        // Predicated region
        $region17: #{qnetwork_forward.1} parent=11 // pred_check
          %p222 = pneg %p83
        $region18: #{qnetwork_forward.1} parent=11 // pred_check_branch
          %224 = sbr.rel (%p222) target = $region20
        $region19: #{qnetwork_forward.1} parent=11 // pred_region
          _
        $region20: #{qnetwork_forward.1} parent=11 // pred_fallthru
          _
        // Predicated region
        $region21: #{qnetwork_forward.1} parent=11 // pred_check
          %p225 = pneg %p104
        $region22: #{qnetwork_forward.1} parent=11 // pred_check_branch
          %227 = sbr.rel (%p225) target = $region24
        $region23: #{qnetwork_forward.1} parent=11 // pred_region
          %229 = vsyncadd [#allocation5], 0
          %s230 = sshll.u32 %s3, 4
          %s231 = int_to_ptr.hbm [resolvable:$true] %s230
          %s232 = sshll.u32 [#allocation4], 4
          %s233 = int_to_ptr.vmem [resolvable:$true] %s232
          %238 = dma.hbm_to_vmem [thread:$0]  %s231, 1024, %s233, [#allocation5], 64, 64, 4
        $region24: #{qnetwork_forward.1} parent=11 // pred_fallthru
          _
        // Predicated region
        $region25: #{qnetwork_forward.1} parent=11 // pred_check
          %p239 = pneg %p125
        $region26: #{qnetwork_forward.1} parent=11 // pred_check_branch
          %241 = sbr.rel (%p239) target = $region28
        $region27: #{qnetwork_forward.1} parent=11 // pred_region
          _
        $region28: #{qnetwork_forward.1} parent=11 // pred_fallthru
          _
        // Predicated region
        $region29: #{qnetwork_forward.1} parent=11 // pred_check
          %p242 = pneg %p146
        $region30: #{qnetwork_forward.1} parent=11 // pred_check_branch
          %244 = sbr.rel (%p242) target = $region32
        $region31: #{qnetwork_forward.1} parent=11 // pred_region
          %246 = vsyncadd [#allocation5], 0
          %s247 = sshll.u32 %s5, 4
          %s248 = int_to_ptr.hbm [resolvable:$true] %s247
          %s249 = sshll.u32 [#allocation6], 4
          %s250 = int_to_ptr.vmem [resolvable:$true] %s249
          %255 = dma.hbm_to_vmem [thread:$0]  %s248, 1024, %s250, [#allocation5], 64, 64, 4
        $region32: #{qnetwork_forward.1} parent=11 // pred_fallthru
          _
        // Predicated region
        $region33: #{qnetwork_forward.1} parent=11 // pred_check
          %p256 = pneg %p167
        $region34: #{qnetwork_forward.1} parent=11 // pred_check_branch
          %258 = sbr.rel (%p256) target = $region36
        $region35: #{qnetwork_forward.1} parent=11 // pred_region
          _
        $region36: #{qnetwork_forward.1} parent=11 // pred_fallthru
          _
      $region12: #{qnetwork_forward.1} parent=5 // pred_fallthru
        _
      %p259 = scmp.lt.s32.totalorder %s15, 2
      // Predicated region
      $region37: #{qnetwork_forward.1} parent=5 // pred_check
        %p260 = pneg %p259
      $region38: #{qnetwork_forward.1} parent=5 // pred_check_branch
        %262 = sbr.rel (%p260) target = $region40
      $region39: #{qnetwork_forward.1} parent=5 // pred_region
        // Predicated region
        $region41: #{qnetwork_forward.1} parent=39 // pred_check
          %p263 = pneg %p35
        $region42: #{qnetwork_forward.1} parent=39 // pred_check_branch
          %265 = sbr.rel (%p263) target = $region44
        $region43: #{qnetwork_forward.1} parent=39 // pred_region
          %p266 = scmp.lt.s32.totalorder %s15, 1
          %s267 = scalar_select %p266, %s15, 1
          %s268 = smul.addr %s267, 4
          %s269 = scalar_lea.vmem %s0, %s268
        $region44: #{qnetwork_forward.1} parent=39 // pred_fallthru
          _
      $region40: #{qnetwork_forward.1} parent=5 // pred_fallthru
        _
      %p270 = scmp.le.s32.totalorder 1, %s15
      %p271 = scmp.lt.s32.totalorder %s15, 3
      %p272 = pnand %p270, %p271
      %p273 = pneg %p272
      // Predicated region
      $region45: #{qnetwork_forward.1} parent=5 // pred_check
        _
      $region46: #{qnetwork_forward.1} parent=5 // pred_check_branch
        %275 = sbr.rel (%p272) target = $region48
      $region47: #{qnetwork_forward.1} parent=5 // pred_region
        %s276 = ssub.s32 %s15, 1
        // Predicated region
        $region49: #{qnetwork_forward.1} parent=47 // pred_check
          %p277 = pneg %p62
        $region50: #{qnetwork_forward.1} parent=47 // pred_check_branch
          %279 = sbr.rel (%p277) target = $region52
        $region51: #{qnetwork_forward.1} parent=47 // pred_region
          %281 = dma.done [#allocation3], 1024
        $region52: #{qnetwork_forward.1} parent=47 // pred_fallthru
          _
        // Predicated region
        $region53: #{qnetwork_forward.1} parent=47 // pred_check
          %p282 = pneg %p104
        $region54: #{qnetwork_forward.1} parent=47 // pred_check_branch
          %284 = sbr.rel (%p282) target = $region56
        $region55: #{qnetwork_forward.1} parent=47 // pred_region
          %286 = dma.done [#allocation5], 1024
        $region56: #{qnetwork_forward.1} parent=47 // pred_fallthru
          _
        // Predicated region
        $region57: #{qnetwork_forward.1} parent=47 // pred_check
          %p287 = pneg %p146
        $region58: #{qnetwork_forward.1} parent=47 // pred_check_branch
          %289 = sbr.rel (%p287) target = $region60
        $region59: #{qnetwork_forward.1} parent=47 // pred_region
          %291 = dma.done [#allocation5], 1024
        $region60: #{qnetwork_forward.1} parent=47 // pred_fallthru
          _
        %p292 = scmp.lt.s32.totalorder %s20, 1
        %s293 = scalar_select %p292, %s20, 1
        %s294 = smul.addr %s293, 4
        %s295 = scalar_lea.vmem %s0, %s294
        %p296 = pneg %p41
        %p297 = pneg %p38
        %p298 = pneg %p62
        %p299 = pneg %p59
        %p300 = pneg %p83
        %p301 = pneg %p80
        %p302 = pneg %p104
        %p303 = pneg %p101
        %p304 = pneg %p125
        %p305 = pneg %p122
        %p306 = pneg %p146
        %p307 = pneg %p143
        %p308 = pneg %p167
        %p309 = pneg %p164
        %p310 = pneg %p193
        %p311 = pneg %p190
        %p312 = scmp.lt.s32.totalorder %s20, 1
        %s313 = scalar_select %p312, %s20, 1
        %s314 = smul.addr %s313, 8
        %s315 = scalar_lea.vmem %s7, %s314
        %p316 = scmp.lt.s32.totalorder %s20, 1
        %s317 = scalar_select %p316, %s20, 1
        %s318 = smul.addr %s317, 4
        %s319 = scalar_lea.vmem %s0, %s318
        %p320 = scmp.lt.s32.totalorder %s20, 1
        %s321 = scalar_select %p320, %s20, 1
        %s322 = smul.addr %s321, 8
        %s323 = scalar_lea.vmem %s7, %s322
        %v324 = vld [vmem:[%s319] sm:$0xf]
        %v325 = vld [vmem:[#allocation2] sm:$0xf]
        %v326 = vld [vmem:[#allocation2 + $0x4] sm:$0xf]
        %v327 = vld [vmem:[#allocation2 + $0x8] sm:$0xf]
        %v328 = vld [vmem:[#allocation2 + $0xc] sm:$0xf]
        %v329 = vld [vmem:[#allocation2 + $0x10] sm:$0xf]
        %v330 = vld [vmem:[#allocation2 + $0x14] sm:$0xf]
        %v331 = vld [vmem:[#allocation2 + $0x18] sm:$0xf]
        %v332 = vld [vmem:[#allocation2 + $0x1c] sm:$0xf]
        %v333 = vld [vmem:[#allocation2 + $0x20] sm:$0xf]
        %v334 = vld [vmem:[#allocation2 + $0x24] sm:$0xf]
        %v335 = vld [vmem:[#allocation2 + $0x28] sm:$0xf]
        %v336 = vld [vmem:[#allocation2 + $0x2c] sm:$0xf]
        %v337 = vld [vmem:[#allocation2 + $0x30] sm:$0xf]
        %v338 = vld [vmem:[#allocation2 + $0x34] sm:$0xf]
        %v339 = vld [vmem:[#allocation2 + $0x38] sm:$0xf]
        %v340 = vld [vmem:[#allocation2 + $0x3c] sm:$0xf]
        %v341 = vld [vmem:[%s2] sm:$0x1]
        %v343 = vperm.slane %v341, 0
        %v361 = vunpack.c.l.b16 %v325
        %v362 = vunpack.c.l.b16 %v326
        %v363 = vunpack.c.l.b16 %v327
        %v364 = vunpack.c.l.b16 %v328
        %v365 = vunpack.c.l.b16 %v329
        %v366 = vunpack.c.l.b16 %v330
        %v367 = vunpack.c.l.b16 %v331
        %v368 = vunpack.c.l.b16 %v332
        %v369 = vunpack.c.l.b16 %v333
        %v370 = vunpack.c.l.b16 %v334
        %v371 = vunpack.c.l.b16 %v335
        %v372 = vunpack.c.l.b16 %v336
        %v373 = vunpack.c.l.b16 %v337
        %v374 = vunpack.c.l.b16 %v338
        %v375 = vunpack.c.l.b16 %v339
        %v376 = vunpack.c.l.b16 %v340
        %v377 = vpack.c.b16 %v362, %v361
        %v378 = vpack.c.b16 %v364, %v363
        %v379 = vpack.c.b16 %v366, %v365
        %v380 = vpack.c.b16 %v368, %v367
        %v381 = vpack.c.b16 %v370, %v369
        %v382 = vpack.c.b16 %v372, %v371
        %v383 = vpack.c.b16 %v374, %v373
        %v384 = vpack.c.b16 %v376, %v375
        %393 = vmatpush.bf16.msra.mxu0 %v384
        %394 = vmatpush.bf16.msra.mxu0 %v383
        %395 = vmatpush.bf16.msra.mxu0 %v382
        %396 = vmatpush.bf16.msra.mxu0 %v381
        %397 = vmatpush.bf16.msra.mxu0 %v380
        %398 = vmatpush.bf16.msra.mxu0 %v379
        %399 = vmatpush.bf16.msra.mxu0 %v378
        %400 = vmatpush.bf16.msra.mxu0 %v377
        %401 = vmatmul.bf16.gmra.mxu0 %v324
        %v402 = vpop.f32.mrf.mxu0
        %v403 = vadd.f32 %v343, %v402
        %v404 = vpop.f32.mrf.mxu0
        %405 = vdwg.mxu0
        %vm406 = vcmp.gt.f32.partialorder %v403, 0.0
        %v407 = vmul.f32 %v403, 0.01
        %v408 = vsel %vm406, %v403, %v407
        %v409 = vpack.c.bf16 %v408, %v408
        %v410 = vld [vmem:[#allocation4] sm:$0xf]
        %v411 = vld [vmem:[#allocation4 + $0x4] sm:$0xf]
        %v412 = vld [vmem:[#allocation4 + $0x8] sm:$0xf]
        %v413 = vld [vmem:[#allocation4 + $0xc] sm:$0xf]
        %v414 = vld [vmem:[#allocation4 + $0x10] sm:$0xf]
        %v415 = vld [vmem:[#allocation4 + $0x14] sm:$0xf]
        %v416 = vld [vmem:[#allocation4 + $0x18] sm:$0xf]
        %v417 = vld [vmem:[#allocation4 + $0x1c] sm:$0xf]
        %v418 = vld [vmem:[#allocation4 + $0x20] sm:$0xf]
        %v419 = vld [vmem:[#allocation4 + $0x24] sm:$0xf]
        %v420 = vld [vmem:[#allocation4 + $0x28] sm:$0xf]
        %v421 = vld [vmem:[#allocation4 + $0x2c] sm:$0xf]
        %v422 = vld [vmem:[#allocation4 + $0x30] sm:$0xf]
        %v423 = vld [vmem:[#allocation4 + $0x34] sm:$0xf]
        %v424 = vld [vmem:[#allocation4 + $0x38] sm:$0xf]
        %v425 = vld [vmem:[#allocation4 + $0x3c] sm:$0xf]
        %v426 = vld [vmem:[%s4] sm:$0x1]
        %v428 = vperm.slane %v426, 0
        %v446 = vunpack.c.l.b16 %v410
        %v447 = vunpack.c.l.b16 %v411
        %v448 = vunpack.c.l.b16 %v412
        %v449 = vunpack.c.l.b16 %v413
        %v450 = vunpack.c.l.b16 %v414
        %v451 = vunpack.c.l.b16 %v415
        %v452 = vunpack.c.l.b16 %v416
        %v453 = vunpack.c.l.b16 %v417
        %v454 = vunpack.c.l.b16 %v418
        %v455 = vunpack.c.l.b16 %v419
        %v456 = vunpack.c.l.b16 %v420
        %v457 = vunpack.c.l.b16 %v421
        %v458 = vunpack.c.l.b16 %v422
        %v459 = vunpack.c.l.b16 %v423
        %v460 = vunpack.c.l.b16 %v424
        %v461 = vunpack.c.l.b16 %v425
        %v462 = vpack.c.b16 %v447, %v446
        %v463 = vpack.c.b16 %v449, %v448
        %v464 = vpack.c.b16 %v451, %v450
        %v465 = vpack.c.b16 %v453, %v452
        %v466 = vpack.c.b16 %v455, %v454
        %v467 = vpack.c.b16 %v457, %v456
        %v468 = vpack.c.b16 %v459, %v458
        %v469 = vpack.c.b16 %v461, %v460
        %478 = vmatpush.bf16.msra.mxu0 %v469
        %479 = vmatpush.bf16.msra.mxu0 %v468
        %480 = vmatpush.bf16.msra.mxu0 %v467
        %481 = vmatpush.bf16.msra.mxu0 %v466
        %482 = vmatpush.bf16.msra.mxu0 %v465
        %483 = vmatpush.bf16.msra.mxu0 %v464
        %484 = vmatpush.bf16.msra.mxu0 %v463
        %485 = vmatpush.bf16.msra.mxu0 %v462
        %486 = vmatmul.bf16.gmra.mxu0 %v409
        %v487 = vpop.f32.mrf.mxu0
        %v488 = vadd.f32 %v428, %v487
        %v489 = vpop.f32.mrf.mxu0
        %490 = vdwg.mxu0
        %vm491 = vcmp.gt.f32.partialorder %v488, 0.0
        %v492 = vmul.f32 %v488, 0.01
        %v493 = vsel %vm491, %v488, %v492
        %v494 = vpack.c.bf16 %v493, %v493
        %v495 = vld [vmem:[#allocation6] sm:$0xf]
        %v496 = vld [vmem:[#allocation6 + $0x4] sm:$0xf]
        %v497 = vld [vmem:[#allocation6 + $0x8] sm:$0xf]
        %v498 = vld [vmem:[#allocation6 + $0xc] sm:$0xf]
        %v499 = vld [vmem:[#allocation6 + $0x10] sm:$0xf]
        %v500 = vld [vmem:[#allocation6 + $0x14] sm:$0xf]
        %v501 = vld [vmem:[#allocation6 + $0x18] sm:$0xf]
        %v502 = vld [vmem:[#allocation6 + $0x1c] sm:$0xf]
        %v503 = vld [vmem:[#allocation6 + $0x20] sm:$0xf]
        %v504 = vld [vmem:[#allocation6 + $0x24] sm:$0xf]
        %v505 = vld [vmem:[#allocation6 + $0x28] sm:$0xf]
        %v506 = vld [vmem:[#allocation6 + $0x2c] sm:$0xf]
        %v507 = vld [vmem:[#allocation6 + $0x30] sm:$0xf]
        %v508 = vld [vmem:[#allocation6 + $0x34] sm:$0xf]
        %v509 = vld [vmem:[#allocation6 + $0x38] sm:$0xf]
        %v510 = vld [vmem:[#allocation6 + $0x3c] sm:$0xf]
        %v511 = vld [vmem:[%s6] sm:$0x1]
        %v513 = vperm.slane %v511, 0
        %v531 = vunpack.c.l.b16 %v495
        %v532 = vunpack.c.l.b16 %v496
        %v533 = vunpack.c.l.b16 %v497
        %v534 = vunpack.c.l.b16 %v498
        %v535 = vunpack.c.l.b16 %v499
        %v536 = vunpack.c.l.b16 %v500
        %v537 = vunpack.c.l.b16 %v501
        %v538 = vunpack.c.l.b16 %v502
        %v539 = vunpack.c.l.b16 %v503
        %v540 = vunpack.c.l.b16 %v504
        %v541 = vunpack.c.l.b16 %v505
        %v542 = vunpack.c.l.b16 %v506
        %v543 = vunpack.c.l.b16 %v507
        %v544 = vunpack.c.l.b16 %v508
        %v545 = vunpack.c.l.b16 %v509
        %v546 = vunpack.c.l.b16 %v510
        %v547 = vpack.c.b16 %v532, %v531
        %v548 = vpack.c.b16 %v534, %v533
        %v549 = vpack.c.b16 %v536, %v535
        %v550 = vpack.c.b16 %v538, %v537
        %v551 = vpack.c.b16 %v540, %v539
        %v552 = vpack.c.b16 %v542, %v541
        %v553 = vpack.c.b16 %v544, %v543
        %v554 = vpack.c.b16 %v546, %v545
        %563 = vmatpush.bf16.msra.mxu0 %v554
        %564 = vmatpush.bf16.msra.mxu0 %v553
        %565 = vmatpush.bf16.msra.mxu0 %v552
        %566 = vmatpush.bf16.msra.mxu0 %v551
        %567 = vmatpush.bf16.msra.mxu0 %v550
        %568 = vmatpush.bf16.msra.mxu0 %v549
        %569 = vmatpush.bf16.msra.mxu0 %v548
        %570 = vmatpush.bf16.msra.mxu0 %v547
        %571 = vmatmul.bf16.gmra.mxu0 %v494
        %v572 = vpop.f32.mrf.mxu0
        %v573 = vadd.f32 %v513, %v572
        %v574 = vpop.f32.mrf.mxu0
        %575 = vdwg.mxu0
        %576 = vst [vmem:[%s323] sm:$0xff] %v573
        %p577 = scmp.lt.s32.totalorder %s20, 1
        %s578 = scalar_select %p577, %s20, 1
        %s579 = smul.addr %s578, 8
        %s580 = scalar_lea.vmem %s7, %s579
        // Predicated region
        $region61: #{qnetwork_forward.1} parent=47 // pred_check
          %p581 = pneg %p190
        $region62: #{qnetwork_forward.1} parent=47 // pred_check_branch
          %583 = sbr.rel (%p581) target = $region64
        $region63: #{qnetwork_forward.1} parent=47 // pred_region
          _
        $region64: #{qnetwork_forward.1} parent=47 // pred_fallthru
          _
      $region48: #{qnetwork_forward.1} parent=5 // pred_fallthru
        _
      %p584 = scmp.le.s32.totalorder 2, %s15
      // Predicated region
      $region65: #{qnetwork_forward.1} parent=5 // pred_check
        %p585 = pneg %p584
      $region66: #{qnetwork_forward.1} parent=5 // pred_check_branch
        %587 = sbr.rel (%p585) target = $region68
      $region67: #{qnetwork_forward.1} parent=5 // pred_region
        %s588 = ssub.s32 %s15, 2
        // Predicated region
        $region69: #{qnetwork_forward.1} parent=67 // pred_check
          %p589 = pneg %p196
        $region70: #{qnetwork_forward.1} parent=67 // pred_check_branch
          %591 = sbr.rel (%p589) target = $region72
        $region71: #{qnetwork_forward.1} parent=67 // pred_region
          %p592 = scmp.lt.s32.totalorder %s21, 1
          %s593 = scalar_select %p592, %s21, 1
          %s594 = smul.addr %s593, 8
          %s595 = scalar_lea.vmem %s7, %s594
        $region72: #{qnetwork_forward.1} parent=67 // pred_fallthru
          _
      $region68: #{qnetwork_forward.1} parent=5 // pred_fallthru
        _
    $region6: #{qnetwork_forward.1} parent=1 // loop_footer
      %s19 = sadd.s32 1, %s15
    $region7: #{qnetwork_forward.1} parent=1 // loop_footer_branch
      %14 = sbr.rel target = $region3
    $region8: #{qnetwork_forward.1} parent=1 // loop_exit
      _
    %596 = vsyncpa [#allocation3], 1
    %s597 = scalar_lea.sflag [#allocation3], 1
    %598 = vsyncpa %s597, 1
    %599 = vsyncpa [#allocation5], 1

</llo_original>
